<compile_context>
chip_gen: v7x
topology: tpu7x:2x2x1
jax: 0.10.0
libtpu: 0.0.40
codegen_flags: <defaults>
</compile_context>

<pallas_src>
import functools

import jax
import jax.numpy as jnp
from jax.experimental import pallas as pl
from jax.experimental.pallas import tpu as pltpu


def _dice_kernel(x_ref, t_ref, o_ref, inter_acc, denom_acc, *,
                 tile_d, acc_w, rem_last, needs_mask):
    k = pl.program_id(1)
    last = pl.num_programs(1) - 1
    num_chunks = tile_d // acc_w
    nd = len(x_ref.shape)

    @pl.when(k == 0)
    def _():
        inter_acc[...] = jnp.zeros_like(inter_acc)
        denom_acc[...] = jnp.zeros_like(denom_acc)

    def accum_chunk(c, mask_rem=None):
        lo = c * acc_w
        idx = (slice(None),) * (nd - 1) + (slice(lo, lo + acc_w),)
        # Native-dtype load, f32 upcast in-register only.
        xc = x_ref[idx].astype(jnp.float32)
        tc = t_ref[idx].astype(jnp.float32)
        if mask_rem is not None:
            # Only emitted for the single partial chunk of the last tile.
            col = lo + jax.lax.broadcasted_iota(jnp.int32, xc.shape, nd - 1)
            valid = col < mask_rem
            xc = jnp.where(valid, xc, 0.0)
            tc = jnp.where(valid, tc, 0.0)
        inter_acc[...] += xc * tc
        denom_acc[...] += xc + tc

    def accum_full_tile():
        for c in range(num_chunks):        # short static unrolled chunk loop
            accum_chunk(c)

    if needs_mask:
        # Unmasked fast path for every step except the ragged last one.
        @pl.when(k < last)
        def _():
            accum_full_tile()

        # Masked path only on the final step; chunk validity is static.
        @pl.when(k == last)
        def _():
            for c in range(num_chunks):
                lo = c * acc_w
                if lo >= rem_last:          # fully out of range: skip (static)
                    break
                accum_chunk(
                    c, mask_rem=None if lo + acc_w <= rem_last else rem_last)
    else:
        accum_full_tile()

    @pl.when(k == last)
    def _():
        smooth = jnp.float32(1.0)
        axes = tuple(range(1, nd))
        inter = jnp.sum(inter_acc[...], axis=axes, keepdims=True)
        denom = jnp.sum(denom_acc[...], axis=axes, keepdims=True)
        dice = 2.0 * (inter + smooth) / (denom + smooth)
        # Partial sum of per-sample dice for this parallel (batch) slice.
        o_ref[...] = jnp.broadcast_to(jnp.sum(dice), o_ref.shape)


def _vmem_capacity_bytes():
    try:
        return int(pltpu.get_tpu_info().vmem_capacity_bytes)
    except Exception:
        return 64 * 1024 * 1024  # conservative default (v7x per-TC VMEM)


@functools.partial(jax.jit, static_argnames=("tile_d",))
def dice_loss(inp, target, tile_d=None):
    """Dice loss matching PyTorch DiceLoss.forward (smooth = 1).

    inp/target: same shape (N, ...), any dtype. They stream from HBM in their
    native dtype and are upcast to f32 in-register, so callers should pass
    bf16 / int8 / bool inputs where possible (halves HBM bytes on v5e/v6e).
    Returns float32: 1 - mean_i(2*(sum(x_i*t_i)+1) / (sum(x_i)+sum(t_i)+1)).
    """
    n = target.shape[0]
    x = inp.reshape(n, -1)            # same element order as torch .view(N, -1)
    t = target.reshape(n, -1)
    d = x.shape[1]

    # Pack 8 vreg sublanes per sample whenever possible (critical for tiny N).
    if d % 8 == 0 and d >= 8:
        sub = 8
        lane_extent = d // 8
        x = x.reshape(n, 8, lane_extent)
        t = t.reshape(n, 8, lane_extent)
    else:
        # Flat (n, d) fallback: correct, but only n of 8 sublanes carry data.
        sub = 1
        lane_extent = d

    # Leading "parallel" axis: split the batch across v7x's two TensorCores.
    if sub == 8:
        p_split = 2 if (n >= 2 and n % 2 == 0) else 1
    else:
        p_split = 2 if (n >= 2 and n % 2 == 0 and (n // 2) % 8 == 0) else 1
    n_per = n // p_split
    rows = n_per * sub                # (sample, sublane) rows per block

    # Fixed-width accumulators sized so both stay <= ~32 vregs for small rows.
    acc_w = max(128, min(512, (16 // max(1, -(-rows // 8))) * 128))
    lanes_pad = pl.cdiv(lane_extent, 128) * 128
    if lanes_pad % acc_w != 0:
        acc_w = 128                   # 128 always divides the padded extent

    # Generation-aware VMEM budgeting (v5e/v6e: 128 MiB, v7x: 64 MiB per TC).
    vmem_cap = _vmem_capacity_bytes()
    vmem_limit = int(min(vmem_cap * 3 // 4, 64 * 1024 * 1024))
    in_bytes = jnp.dtype(inp.dtype).itemsize + jnp.dtype(target.dtype).itemsize
    per_lane = rows * in_bytes * 2                      # double-buffered x & t
    acc_bytes = 2 * rows * acc_w * 4
    budget = max(0, vmem_limit * 3 // 5 - acc_bytes)    # leave headroom
    auto_tile = (budget // per_lane) // acc_w * acc_w
    if tile_d is None:
        tile_d = auto_tile
    else:
        tile_d = min(int(tile_d), auto_tile)            # guard user tile vs VMEM
    tile_cap = min(8192, lanes_pad)
    tile_d = int(max(acc_w, min((tile_d // acc_w) * acc_w, tile_cap)))

    grid_k = pl.cdiv(lane_extent, tile_d)
    rem_last = lane_extent - (grid_k - 1) * tile_d
    needs_mask = rem_last != tile_d

    if sub == 8:
        block_shape = (n_per, 8, tile_d)
        acc_shape = (n_per, 8, acc_w)
        index_map = lambda p, k: (p, 0, k)
    else:
        block_shape = (n_per, tile_d)
        acc_shape = (n_per, acc_w)
        index_map = lambda p, k: (p, k)

    kernel = functools.partial(
        _dice_kernel, tile_d=tile_d, acc_w=acc_w,
        rem_last=rem_last, needs_mask=needs_mask)

    partial_dice = pl.pallas_call(
        kernel,
        out_shape=jax.ShapeDtypeStruct((p_split, 1, 1), jnp.float32),
        grid_spec=pltpu.PrefetchScalarGridSpec(
            num_scalar_prefetch=0,
            grid=(p_split, grid_k),
            in_specs=[
                pl.BlockSpec(block_shape, index_map),
                pl.BlockSpec(block_shape, index_map),
            ],
            out_specs=pl.BlockSpec((1, 1, 1), lambda p, k: (p, 0, 0)),
            scratch_shapes=[
                pltpu.VMEM(acc_shape, jnp.float32),   # running sum(x * t)
                pltpu.VMEM(acc_shape, jnp.float32),   # running sum(x + t)
            ],
        ),
        compiler_params=pltpu.CompilerParams(
            dimension_semantics=("parallel", "arbitrary"),
            vmem_limit_bytes=vmem_limit,
        ),
    )(x, t)

    # Tiny final combine: sum of per-sample dice across the parallel halves.
    return jnp.float32(1.0) - jnp.sum(partial_dice) / jnp.float32(n)


def _dice_loss_ref(inp, target):
    n = target.shape[0]
    smooth = 1.0
    x = inp.reshape(n, -1).astype(jnp.float32)
    t = target.reshape(n, -1).astype(jnp.float32)
    inter = (x * t).sum(axis=1)
    dice = 2.0 * (inter + smooth) / (x.sum(axis=1) + t.sum(axis=1) + smooth)
    return 1.0 - dice.sum() / n


if __name__ == "__main__":
    key = jax.random.PRNGKey(0)
    k1, k2 = jax.random.split(key)
    # Small NCHW shapes: batch=2, channels=4, spatial=16x16 -> D = 1024.
    x = jax.nn.sigmoid(jax.random.normal(k1, (2, 4, 16, 16), dtype=jnp.float32))
    y = (jax.random.uniform(k2, (2, 4, 16, 16)) > 0.5).astype(jnp.float32)

    loss = dice_loss(x, y)
    jax.block_until_ready(loss)

    ref = _dice_loss_ref(x, y)
    assert jnp.allclose(loss, ref, rtol=1e-5, atol=1e-5), (loss, ref)
    print("KERNEL_OK")
</pallas_src>

<mosaic_0001>
module attributes {stable_mosaic.version = 11 : i64} {
  func.func @_dice_kernel(%arg0: i32, %arg1: i32, %arg2: memref<1x8x128xf32, #tpu.memory_space<vmem>>, %arg3: memref<1x8x128xf32, #tpu.memory_space<vmem>>, %arg4: memref<1x1x1xf32, #tpu.memory_space<vmem>>, %arg5: memref<1x8x128xf32, #tpu.memory_space<vmem>>, %arg6: memref<1x8x128xf32, #tpu.memory_space<vmem>>) attributes {dimension_semantics = [#tpu.dimension_semantics<parallel>, #tpu.dimension_semantics<arbitrary>], iteration_bounds = array<i64: 2, 1>, scalar_prefetch = 0 : i64, scratch_operands = 2 : i64, tpu.core_type = #tpu.core_type<tc>, window_params = [{transform_indices = @transform_0, window_bounds = array<i64: 1, 8, 128>}, {transform_indices = @transform_1, window_bounds = array<i64: 1, 8, 128>}, {transform_indices = @transform_2, window_bounds = array<i64: 1, 1, 1>}]} {
    %c0_i32 = arith.constant 0 : i32
    %0 = arith.cmpi eq, %arg1, %c0_i32 : i32
    %1 = arith.extui %0 : i1 to i32
    %c0_i32_0 = arith.constant 0 : i32
    %2 = arith.cmpi ne, %1, %c0_i32_0 : i32
    scf.if %2 {
      %cst = arith.constant 0.000000e+00 : f32
      %16 = vector.broadcast %cst : f32 to vector<1x8x128xf32>
      %c0_20 = arith.constant 0 : index
      %c0_21 = arith.constant 0 : index
      %c0_22 = arith.constant 0 : index
      %17 = vector.load %arg5[%c0_20, %c0_21, %c0_22] : memref<1x8x128xf32, #tpu.memory_space<vmem>>, vector<1x8x128xf32>
      tpu.vector_store %arg5[%c0_20, %c0_21, %c0_22], %16 {strides = array<i32>} : memref<1x8x128xf32, #tpu.memory_space<vmem>>, vector<1x8x128xf32>,
      %cst_23 = arith.constant 0.000000e+00 : f32
      %18 = vector.broadcast %cst_23 : f32 to vector<1x8x128xf32>
      %c0_24 = arith.constant 0 : index
      %c0_25 = arith.constant 0 : index
      %c0_26 = arith.constant 0 : index
      %19 = vector.load %arg6[%c0_24, %c0_25, %c0_26] : memref<1x8x128xf32, #tpu.memory_space<vmem>>, vector<1x8x128xf32>
      tpu.vector_store %arg6[%c0_24, %c0_25, %c0_26], %18 {strides = array<i32>} : memref<1x8x128xf32, #tpu.memory_space<vmem>>, vector<1x8x128xf32>,
    } else {
    }
    %c0 = arith.constant 0 : index
    %c0_1 = arith.constant 0 : index
    %c0_2 = arith.constant 0 : index
    %3 = vector.load %arg2[%c0, %c0_1, %c0_2] : memref<1x8x128xf32, #tpu.memory_space<vmem>>, vector<1x8x128xf32>
    %c0_3 = arith.constant 0 : index
    %c0_4 = arith.constant 0 : index
    %c0_5 = arith.constant 0 : index
    %4 = vector.load %arg3[%c0_3, %c0_4, %c0_5] : memref<1x8x128xf32, #tpu.memory_space<vmem>>, vector<1x8x128xf32>
    %c0_6 = arith.constant 0 : index
    %c0_7 = arith.constant 0 : index
    %c0_8 = arith.constant 0 : index
    %5 = vector.load %arg5[%c0_6, %c0_7, %c0_8] : memref<1x8x128xf32, #tpu.memory_space<vmem>>, vector<1x8x128xf32>
    %6 = arith.mulf %3, %4 : vector<1x8x128xf32>
    %7 = arith.addf %5, %6 : vector<1x8x128xf32>
    %c0_9 = arith.constant 0 : index
    %c0_10 = arith.constant 0 : index
    %c0_11 = arith.constant 0 : index
    %8 = vector.load %arg5[%c0_9, %c0_10, %c0_11] : memref<1x8x128xf32, #tpu.memory_space<vmem>>, vector<1x8x128xf32>
    tpu.vector_store %arg5[%c0_9, %c0_10, %c0_11], %7 {strides = array<i32>} : memref<1x8x128xf32, #tpu.memory_space<vmem>>, vector<1x8x128xf32>,
    %c0_12 = arith.constant 0 : index
    %c0_13 = arith.constant 0 : index
    %c0_14 = arith.constant 0 : index
    %9 = vector.load %arg6[%c0_12, %c0_13, %c0_14] : memref<1x8x128xf32, #tpu.memory_space<vmem>>, vector<1x8x128xf32>
    %10 = arith.addf %3, %4 : vector<1x8x128xf32>
    %11 = arith.addf %9, %10 : vector<1x8x128xf32>
    %c0_15 = arith.constant 0 : index
    %c0_16 = arith.constant 0 : index
    %c0_17 = arith.constant 0 : index
    %12 = vector.load %arg6[%c0_15, %c0_16, %c0_17] : memref<1x8x128xf32, #tpu.memory_space<vmem>>, vector<1x8x128xf32>
    tpu.vector_store %arg6[%c0_15, %c0_16, %c0_17], %11 {strides = array<i32>} : memref<1x8x128xf32, #tpu.memory_space<vmem>>, vector<1x8x128xf32>,
    %c0_i32_18 = arith.constant 0 : i32
    %13 = arith.cmpi eq, %arg1, %c0_i32_18 : i32
    %14 = arith.extui %13 : i1 to i32
    %c0_i32_19 = arith.constant 0 : i32
    %15 = arith.cmpi ne, %14, %c0_i32_19 : i32
    scf.if %15 {
      %c0_20 = arith.constant 0 : index
      %c0_21 = arith.constant 0 : index
      %c0_22 = arith.constant 0 : index
      %16 = vector.load %arg5[%c0_20, %c0_21, %c0_22] : memref<1x8x128xf32, #tpu.memory_space<vmem>>, vector<1x8x128xf32>
      %cst = arith.constant dense<0.000000e+00> : vector<1xf32>
      %17 = vector.multi_reduction <add>, %16, %cst [1, 2] : vector<1x8x128xf32> to vector<1xf32>
      %18 = vector.shape_cast %17 : vector<1xf32> to vector<1x1x1xf32>
      %c0_23 = arith.constant 0 : index
      %c0_24 = arith.constant 0 : index
      %c0_25 = arith.constant 0 : index
      %19 = vector.load %arg6[%c0_23, %c0_24, %c0_25] : memref<1x8x128xf32, #tpu.memory_space<vmem>>, vector<1x8x128xf32>
      %cst_26 = arith.constant dense<0.000000e+00> : vector<1xf32>
      %20 = vector.multi_reduction <add>, %19, %cst_26 [1, 2] : vector<1x8x128xf32> to vector<1xf32>
      %21 = vector.shape_cast %20 : vector<1xf32> to vector<1x1x1xf32>
      %cst_27 = arith.constant 1.000000e+00 : f32
      %22 = vector.broadcast %cst_27 : f32 to vector<1x1x1xf32>
      %23 = arith.addf %18, %22 : vector<1x1x1xf32>
      %cst_28 = arith.constant 2.000000e+00 : f32
      %24 = vector.broadcast %cst_28 : f32 to vector<1x1x1xf32>
      %25 = arith.mulf %24, %23 : vector<1x1x1xf32>
      %cst_29 = arith.constant 1.000000e+00 : f32
      %26 = vector.broadcast %cst_29 : f32 to vector<1x1x1xf32>
      %27 = arith.addf %21, %26 : vector<1x1x1xf32>
      %28 = arith.divf %25, %27 : vector<1x1x1xf32>
      %29 = vector.shape_cast %28 : vector<1x1x1xf32> to vector<1x1x1x1xf32>
      %cst_30 = arith.constant dense<0.000000e+00> : vector<1xf32>
      %30 = vector.multi_reduction <add>, %29, %cst_30 [1, 2, 3] : vector<1x1x1x1xf32> to vector<1xf32>
      %31 = vector.shape_cast %30 : vector<1xf32> to vector<1x1x1x1xf32>
      %32 = vector.extract %31[0, 0, 0, 0] : f32 from vector<1x1x1x1xf32>
      %33 = vector.broadcast %32 : f32 to vector<1x1x1xf32>
      %c0_31 = arith.constant 0 : index
      %c0_32 = arith.constant 0 : index
      %c0_33 = arith.constant 0 : index
      %34 = vector.load %arg4[%c0_31, %c0_32, %c0_33] : memref<1x1x1xf32, #tpu.memory_space<vmem>>, vector<1x1x1xf32>
      tpu.vector_store %arg4[%c0_31, %c0_32, %c0_33], %33 {strides = array<i32>} : memref<1x1x1xf32, #tpu.memory_space<vmem>>, vector<1x1x1xf32>,
    } else {
    }
    return
  }
  func.func @transform_0(%arg0: i32, %arg1: i32) -> (i32, i32, i32) {
    %c0_i32 = arith.constant 0 : i32
    %c0_i32_0 = arith.constant 0 : i32
    return %arg0, %c0_i32, %arg1 : i32, i32, i32
  }
  func.func @transform_1(%arg0: i32, %arg1: i32) -> (i32, i32, i32) {
    %c0_i32 = arith.constant 0 : i32
    %c0_i32_0 = arith.constant 0 : i32
    return %arg0, %c0_i32, %arg1 : i32, i32, i32
  }
  func.func @transform_2(%arg0: i32, %arg1: i32) -> (i32, i32, i32) {
    %c0_i32 = arith.constant 0 : i32
    %c0_i32_0 = arith.constant 0 : i32
    %c0_i32_1 = arith.constant 0 : i32
    return %arg0, %c0_i32, %c0_i32_0 : i32, i32, i32
  }
}

</mosaic_0001>

<llo_original>
// kernel: dice_loss.1
$region0: #{dice_loss.1}
  #allocation0 [shape = 'u32[]', space=smem, size = 0x4, offset = 0x4, fixed_abs, tag = 'smem constant byte address 0x4 - core index']
  #allocation1 [shape = 'u32[144,128]{1,0:T(1,128)}', space=vmem, size = 0x12000, scoped, tag = 'internal scratch']
  #allocation2 [shape = 'f32[1,8,128]{2,1,0:T(8,128)}', space=vmem, size = 0x1000, scoped, tag = 'scratch operand']
  #allocation3 [shape = 'f32[1,8,128]{2,1,0:T(8,128)}', space=vmem, size = 0x1000, scoped, tag = 'scratch operand']
  %s0 = inlined_call_operand.vmem [shape: f32[2,8,128], index: 0, kind: input, shape index: {}]
  %s1 = inlined_call_operand.vmem [shape: f32[2,8,128], index: 1, kind: input, shape index: {}]
  %s2 = inlined_call_operand.vmem [shape: f32[2,1,1], index: 2, kind: output, shape index: {}]
  %s3 = sld [smem:[#allocation0]]
  $region49: #{dice_loss.1} parent=0
    _
  %s5 = ssub.s32 1, %s3
  %s6 = scalar_select 0, %s5, %s3
  loop: start=0, step=1, limit=4
  $region2: #{dice_loss.1} parent=0 // loop_pre_header
    _
  $region3: #{dice_loss.1} parent=0 // loop_header
    %s8 = sphi 0, %s12
    %p9 = scmp.ge.s32.totalorder %s8, 4
    %s15 = sphi 0, %s27
    %s16 = sphi 0, %s23
    %s17 = sphi 0, %s15
    %s18 = sphi 0, %s16
    %s19 = sphi 0, %s17
    %s20 = sphi 0, %s18
    %s32 = sphi 0, %s34
    %s35 = sphi 0, %s32
    %s36 = sphi 0, %s35
    %s52 = sphi 0, %s36
    %s60 = sphi 0, %s62
    %s63 = sphi 0, %s60
    %s64 = sphi 0, %s63
    %s80 = sphi 0, %s64
    %s86 = sphi 0, %s88
    %s89 = sphi 0, %s86
    %s90 = sphi 0, %s89
    %s106 = sphi 0, %s90
  $region4: #{dice_loss.1} parent=0 // loop_header_branch
    %11 = sbr.rel (%p9) target = $region8
  $region5: #{dice_loss.1} parent=0 // loop_body
    %s13 = ssub.s32 %s8, 1
    %s14 = ssub.s32 %s8, 2
    %s21 = sadd.s32 1, %s16
    %p22 = scmp.ge.s32.totalorder %s21, 1
    %s23 = scalar_select %p22, 0, %s21
    %s24 = sadd.s32 1, %s15
    %s25 = scalar_select %p22, %s24, %s15
    %p26 = scmp.ge.s32.totalorder %s25, 2
    %s27 = scalar_select %p26, 0, %s25
    %s28 = ssub.s32 %s15, %s27
    %s29 = ssub.s32 %s16, %s23
    %s30 = sor.u32 %s28, %s29
    %p31 = scmp.eq.s32.totalorder %s30, 0
    %s33 = sadd.s32 %s32, 1
    %s34 = scalar_select %p31, %s32, %s33
    %p37 = pneg %p31
    %p38 = scmp.eq.s32.totalorder %s8, 1
    %p39 = por %p37, %p38
    %p40 = scmp.ne.s32.totalorder %s32, %s35
    %p41 = scmp.eq.s32.totalorder %s8, 0
    %p42 = por %p40, %p41
    %p43 = scmp.ne.s32.totalorder %s32, %s35
    %p44 = scmp.eq.s32.totalorder %s13, 1
    %p45 = por %p43, %p44
    %p46 = scmp.ne.s32.totalorder %s35, %s36
    %p47 = scmp.eq.s32.totalorder %s13, 0
    %p48 = por %p46, %p47
    %p49 = scmp.ne.s32.totalorder %s35, %s36
    %p50 = scmp.eq.s32.totalorder %s14, 1
    %p51 = por %p49, %p50
    %p53 = scmp.ne.s32.totalorder %s36, %s52
    %p54 = scmp.eq.s32.totalorder %s14, 0
    %p55 = por %p53, %p54
    %s56 = ssub.s32 %s15, %s27
    %s57 = ssub.s32 %s16, %s23
    %s58 = sor.u32 %s56, %s57
    %p59 = scmp.eq.s32.totalorder %s58, 0
    %s61 = sadd.s32 %s60, 1
    %s62 = scalar_select %p59, %s60, %s61
    %p65 = pneg %p59
    %p66 = scmp.eq.s32.totalorder %s8, 1
    %p67 = por %p65, %p66
    %p68 = scmp.ne.s32.totalorder %s60, %s63
    %p69 = scmp.eq.s32.totalorder %s8, 0
    %p70 = por %p68, %p69
    %p71 = scmp.ne.s32.totalorder %s60, %s63
    %p72 = scmp.eq.s32.totalorder %s13, 1
    %p73 = por %p71, %p72
    %p74 = scmp.ne.s32.totalorder %s63, %s64
    %p75 = scmp.eq.s32.totalorder %s13, 0
    %p76 = por %p74, %p75
    %p77 = scmp.ne.s32.totalorder %s63, %s64
    %p78 = scmp.eq.s32.totalorder %s14, 1
    %p79 = por %p77, %p78
    %p81 = scmp.ne.s32.totalorder %s64, %s80
    %p82 = scmp.eq.s32.totalorder %s14, 0
    %p83 = por %p81, %p82
    %s84 = ssub.s32 %s15, %s27
    %p85 = scmp.eq.s32.totalorder %s84, 0
    %s87 = sadd.s32 %s86, 1
    %s88 = scalar_select %p85, %s86, %s87
    %p91 = pneg %p85
    %p92 = scmp.eq.s32.totalorder %s8, 1
    %p93 = por %p91, %p92
    %p94 = scmp.ne.s32.totalorder %s86, %s89
    %p95 = scmp.eq.s32.totalorder %s8, 0
    %p96 = por %p94, %p95
    %p97 = scmp.ne.s32.totalorder %s86, %s89
    %p98 = scmp.eq.s32.totalorder %s13, 1
    %p99 = por %p97, %p98
    %p100 = scmp.ne.s32.totalorder %s89, %s90
    %p101 = scmp.eq.s32.totalorder %s13, 0
    %p102 = por %p100, %p101
    %p103 = scmp.ne.s32.totalorder %s89, %s90
    %p104 = scmp.eq.s32.totalorder %s14, 1
    %p105 = por %p103, %p104
    %p107 = scmp.ne.s32.totalorder %s90, %s106
    %p108 = scmp.eq.s32.totalorder %s14, 0
    %p109 = por %p107, %p108
    %p110 = scmp.le.s32.totalorder 1, %s8
    %p111 = scmp.lt.s32.totalorder %s8, 3
    %p112 = pnand %p110, %p111
    %p113 = pneg %p112
    // Predicated region
    $region9: #{dice_loss.1} parent=5 // pred_check
      _
    $region10: #{dice_loss.1} parent=5 // pred_check_branch
      %115 = sbr.rel (%p112) target = $region12
    $region11: #{dice_loss.1} parent=5 // pred_region
      %s116 = ssub.s32 %s8, 1
    $region12: #{dice_loss.1} parent=5 // pred_fallthru
      _
    %p117 = scmp.lt.s32.totalorder %s8, 2
    // Predicated region
    $region13: #{dice_loss.1} parent=5 // pred_check
      %p118 = pneg %p117
    $region14: #{dice_loss.1} parent=5 // pred_check_branch
      %120 = sbr.rel (%p118) target = $region16
    $region15: #{dice_loss.1} parent=5 // pred_region
      // Predicated region
      $region17: #{dice_loss.1} parent=15 // pred_check
        %p121 = pneg %p42
      $region18: #{dice_loss.1} parent=15 // pred_check_branch
        %123 = sbr.rel (%p121) target = $region20
      $region19: #{dice_loss.1} parent=15 // pred_region
        %p124 = scmp.lt.s32.totalorder %s15, 1
        %s125 = scalar_select %p124, %s15, 1
        %p126 = scmp.lt.s32.totalorder %s16, 0
        %s127 = scalar_select %p126, %s16, 0
        %s128 = sadd.s32 %s127, %s125
        %s129 = smul.addr %s128, 8
        %s130 = scalar_lea.vmem %s0, %s129
      $region20: #{dice_loss.1} parent=15 // pred_fallthru
        _
      // Predicated region
      $region21: #{dice_loss.1} parent=15 // pred_check
        %p131 = pneg %p70
      $region22: #{dice_loss.1} parent=15 // pred_check_branch
        %133 = sbr.rel (%p131) target = $region24
      $region23: #{dice_loss.1} parent=15 // pred_region
        %p134 = scmp.lt.s32.totalorder %s15, 1
        %s135 = scalar_select %p134, %s15, 1
        %p136 = scmp.lt.s32.totalorder %s16, 0
        %s137 = scalar_select %p136, %s16, 0
        %s138 = sadd.s32 %s137, %s135
        %s139 = smul.addr %s138, 8
        %s140 = scalar_lea.vmem %s1, %s139
      $region24: #{dice_loss.1} parent=15 // pred_fallthru
        _
    $region16: #{dice_loss.1} parent=5 // pred_fallthru
      _
    %p141 = scmp.le.s32.totalorder 1, %s8
    %p142 = scmp.lt.s32.totalorder %s8, 3
    %p143 = pnand %p141, %p142
    %p144 = pneg %p143
    // Predicated region
    $region25: #{dice_loss.1} parent=5 // pred_check
      _
    $region26: #{dice_loss.1} parent=5 // pred_check_branch
      %146 = sbr.rel (%p143) target = $region28
    $region27: #{dice_loss.1} parent=5 // pred_region
      %s147 = ssub.s32 %s8, 1
      %p148 = scmp.lt.s32.totalorder %s17, 1
      %s149 = scalar_select %p148, %s17, 1
      %p150 = scmp.lt.s32.totalorder %s18, 0
      %s151 = scalar_select %p150, %s18, 0
      %s152 = sadd.s32 %s151, %s149
      %s153 = smul.addr %s152, 8
      %s154 = scalar_lea.vmem %s0, %s153
      %p155 = pneg %p48
      %p156 = pneg %p45
      %p157 = scmp.lt.s32.totalorder %s17, 1
      %s158 = scalar_select %p157, %s17, 1
      %p159 = scmp.lt.s32.totalorder %s18, 0
      %s160 = scalar_select %p159, %s18, 0
      %s161 = sadd.s32 %s160, %s158
      %s162 = smul.addr %s161, 8
      %s163 = scalar_lea.vmem %s1, %s162
      %p164 = pneg %p76
      %p165 = pneg %p73
      %p166 = pneg %p102
      %p167 = pneg %p99
      %p168 = scmp.lt.s32.totalorder %s17, 1
      %s169 = scalar_select %p168, %s17, 1
      %s170 = scalar_lea.vmem %s2, %s169
      %p171 = scmp.lt.s32.totalorder %s17, 1
      %s172 = scalar_select %p171, %s17, 1
      %p173 = scmp.lt.s32.totalorder %s18, 0
      %s174 = scalar_select %p173, %s18, 0
      %s175 = sadd.s32 %s174, %s172
      %s176 = smul.addr %s175, 8
      %s177 = scalar_lea.vmem %s0, %s176
      %p178 = scmp.lt.s32.totalorder %s17, 1
      %s179 = scalar_select %p178, %s17, 1
      %p180 = scmp.lt.s32.totalorder %s18, 0
      %s181 = scalar_select %p180, %s18, 0
      %s182 = sadd.s32 %s181, %s179
      %s183 = smul.addr %s182, 8
      %s184 = scalar_lea.vmem %s1, %s183
      %p185 = scmp.lt.s32.totalorder %s17, 1
      %s186 = scalar_select %p185, %s17, 1
      %s187 = scalar_lea.vmem %s2, %s186
      %p188 = scmp.eq.s32.totalorder %s18, 0
      // Predicated region
      $region29: #{dice_loss.1} parent=27 // pred_check
        %p189 = pneg %p188
      $region30: #{dice_loss.1} parent=27 // pred_check_branch
        %191 = sbr.rel (%p189) target = $region32
      $region31: #{dice_loss.1} parent=27 // pred_region
        %192 = vst [vmem:[#allocation2] sm:$0xff] 0.0
        %193 = vst [vmem:[#allocation3] sm:$0xff] 0.0
      $region32: #{dice_loss.1} parent=27 // pred_fallthru
        _
      %v194 = vld [vmem:[%s177] sm:$0xff]
      %v195 = vld [vmem:[%s184] sm:$0xff]
      %v196 = vld [vmem:[#allocation2] sm:$0xff]
      %v197 = vmul.f32 %v194, %v195
      %v198 = vadd.f32 %v196, %v197
      %199 = vst [vmem:[#allocation2] sm:$0xff] %v198
      %v200 = vld [vmem:[#allocation3] sm:$0xff]
      %v201 = vadd.f32 %v194, %v195
      %v202 = vadd.f32 %v200, %v201
      %203 = vst [vmem:[#allocation3] sm:$0xff] %v202
      // Predicated region
      $region33: #{dice_loss.1} parent=27 // pred_check
        %p204 = pneg %p188
      $region34: #{dice_loss.1} parent=27 // pred_check_branch
        %206 = sbr.rel (%p204) target = $region36
      $region35: #{dice_loss.1} parent=27 // pred_region
        %v207 = vld [vmem:[#allocation2] sm:$0xff]
        %208 = vadd.xlane.f32.xlu0 %v207
        %v209 = vpop.xlane.xlu0 %208
        %v210 = vrot.slane %v209, 4
        %v211 = vadd.f32 %v209, %v210
        %v212 = vrot.slane %v211, 2
        %v213 = vadd.f32 %v211, %v212
        %v214 = vrot.slane %v213, 1
        %v215 = vadd.f32 %v213, %v214
        %v216 = vld [vmem:[#allocation3] sm:$0xff]
        %217 = vadd.xlane.f32.xlu0 %v216
        %v218 = vpop.xlane.xlu0 %217
        %v219 = vrot.slane %v218, 4
        %v220 = vadd.f32 %v218, %v219
        %v221 = vrot.slane %v220, 2
        %v222 = vadd.f32 %v220, %v221
        %v223 = vrot.slane %v222, 1
        %v224 = vadd.f32 %v222, %v223
        %v225 = vadd.f32 %v215, 1.0
        %v226 = vmul.f32 %v225, 2.0
        %v227 = vadd.f32 %v224, 1.0
        %v228 = vrcp.pop %v227
        %v229 = vmul.f32 %v226, %v228
        %v230 = vadd.f32 %v229, 0.0
        %s231 = vtos %v230
        %v232 = vstv %s231
        %vm233 = vcmask 0
        %234 = vst.msk [vmem:[%s187] sm:$0x1] %vm233, %v232
      $region36: #{dice_loss.1} parent=27 // pred_fallthru
        _
      %p235 = scmp.lt.s32.totalorder %s17, 1
      %s236 = scalar_select %p235, %s17, 1
      %s237 = scalar_lea.vmem %s2, %s236
      // Predicated region
      $region37: #{dice_loss.1} parent=27 // pred_check
        %p238 = pneg %p99
      $region38: #{dice_loss.1} parent=27 // pred_check_branch
        %240 = sbr.rel (%p238) target = $region40
      $region39: #{dice_loss.1} parent=27 // pred_region
        _
      $region40: #{dice_loss.1} parent=27 // pred_fallthru
        _
    $region28: #{dice_loss.1} parent=5 // pred_fallthru
      _
    %p241 = scmp.le.s32.totalorder 2, %s8
    // Predicated region
    $region41: #{dice_loss.1} parent=5 // pred_check
      %p242 = pneg %p241
    $region42: #{dice_loss.1} parent=5 // pred_check_branch
      %244 = sbr.rel (%p242) target = $region44
    $region43: #{dice_loss.1} parent=5 // pred_region
      %s245 = ssub.s32 %s8, 2
      // Predicated region
      $region45: #{dice_loss.1} parent=43 // pred_check
        %p246 = pneg %p105
      $region46: #{dice_loss.1} parent=43 // pred_check_branch
        %248 = sbr.rel (%p246) target = $region48
      $region47: #{dice_loss.1} parent=43 // pred_region
        %p249 = scmp.lt.s32.totalorder %s19, 1
        %s250 = scalar_select %p249, %s19, 1
        %s251 = scalar_lea.vmem %s2, %s250
      $region48: #{dice_loss.1} parent=43 // pred_fallthru
        _
    $region44: #{dice_loss.1} parent=5 // pred_fallthru
      _
  $region6: #{dice_loss.1} parent=0 // loop_footer
    %s12 = sadd.s32 1, %s8
  $region7: #{dice_loss.1} parent=0 // loop_footer_branch
    %7 = sbr.rel target = $region3
  $region8: #{dice_loss.1} parent=0 // loop_exit
    _

</llo_original>
